<compile_context>
chip_gen: v7x
topology: tpu7x:2x2x1
jax: 0.10.0
libtpu: 0.0.40
codegen_flags: <defaults>
</compile_context>

<pallas_src>
import jax
import jax.numpy as jnp
from jax.experimental import pallas as pl
from jax.experimental.pallas import tpu as pltpu

FP8_MAX = 448.0  # float8_e4m3fn max


def _silu_mul_fp8_linear_kernel(scale_ref, gate_ref, up_ref, w_ref, o_ref, acc_ref):
    # scale_ref: SMEM (1,) f32             -- wscale (acts as both act and weight scale)
    # gate_ref:  VMEM (tile_m, tile_k)     -- x[:, :H] k-slice
    # up_ref:    VMEM (tile_m, tile_k)     -- x[:, H:] k-slice
    # w_ref:     VMEM (tile_k, H) bf16     -- weight k-slice (fp8 values, exactly held in bf16)
    # o_ref:     VMEM (tile_m, H)          -- output tile (resident across k)
    # acc_ref:   VMEM (tile_m, H) f32      -- accumulator scratch
    k = pl.program_id(1)

    @pl.when(k == 0)
    def _():
        acc_ref[...] = jnp.zeros_like(acc_ref)

    s = scale_ref[0]
    inv_s = 1.0 / s  # scalar reciprocal, hoisted out of the vector path

    # SiLU(gate) * up in f32 (required precision for sigmoid on all generations).
    gate = gate_ref[...].astype(jnp.float32)
    up = up_ref[...].astype(jnp.float32)
    y = gate * jax.nn.sigmoid(gate) * up

    # Static per-tensor fp8 quantization (round-trip cast == quantize->scaled_mm input).
    q = jnp.clip(y * inv_s, -FP8_MAX, FP8_MAX).astype(jnp.float8_e4m3fn)
    # bf16 operands for the MXU; fp8 values are exactly representable in bf16,
    # products are computed exactly and accumulated in f32 -> bit-exact vs f32 matmul.
    q_bf16 = q.astype(jnp.float32).astype(jnp.bfloat16)

    acc_ref[...] += jnp.dot(q_bf16, w_ref[...], preferred_element_type=jnp.float32)

    @pl.when(k == pl.num_programs(1) - 1)
    def _():
        s2 = s * s  # scaled_mm dequant: input_scale * weight_scale (both == wscale)
        o_ref[...] = (acc_ref[...] * s2).astype(o_ref.dtype)


def _pick_tile(total, prefs):
    for p in prefs:
        if total % p == 0:
            return p
    return total


def silu_mul_fp8_linear(x, w_fp8_t, wscale, *, tile_m=None, tile_k=None):
    """x: [T, 2H]; w_fp8_t: [H_in, H_out] float8_e4m3fn (already transposed);
    wscale: scalar f32 array of shape (1,)."""
    T, two_h = x.shape
    H = two_h // 2
    assert w_fp8_t.shape == (H, H)

    if tile_m is None:
        tile_m = _pick_tile(T, (256, 128, 64, 32, 16, 8))
    if tile_k is None:
        tile_k = _pick_tile(H, (512, 256, 128))
    assert T % tile_m == 0 and H % tile_k == 0
    # TODO(synk): ragged T / H not multiple of tile would need padding or BoundedSlice.

    # Two lane-contiguous views of x; avoids a (T, 2H) f32 copy inside the kernel.
    gate = x[:, :H]
    up = x[:, H:]
    # Keep the weight narrow: fp8 -> bf16 is exact and halves weight HBM/VMEM vs f32.
    w_bf16 = w_fp8_t.astype(jnp.bfloat16)

    grid = (T // tile_m, H // tile_k)
    return pl.pallas_call(
        _silu_mul_fp8_linear_kernel,
        out_shape=jax.ShapeDtypeStruct((T, H), x.dtype),
        grid_spec=pltpu.PrefetchScalarGridSpec(
            num_scalar_prefetch=0,
            grid=grid,
            in_specs=[
                pl.BlockSpec(memory_space=pltpu.MemorySpace.SMEM),        # wscale
                pl.BlockSpec((tile_m, tile_k), lambda i, k: (i, k)),      # gate k-slice
                pl.BlockSpec((tile_m, tile_k), lambda i, k: (i, k)),      # up   k-slice
                pl.BlockSpec((tile_k, H), lambda i, k: (k, 0)),           # weight k-slice
            ],
            out_specs=pl.BlockSpec((tile_m, H), lambda i, k: (i, 0)),
            scratch_shapes=[pltpu.VMEM((tile_m, H), jnp.float32)],
        ),
        compiler_params=pltpu.CompilerParams(
            dimension_semantics=("parallel", "arbitrary")),
    )(wscale, gate, up, w_bf16)


def reference(x, w_fp8_t, wscale):
    s = wscale[0]
    inv_s = 1.0 / s
    h = x.shape[-1] // 2
    gate = x[:, :h].astype(jnp.float32)
    up = x[:, h:].astype(jnp.float32)
    y = gate * jax.nn.sigmoid(gate) * up
    q = jnp.clip(y * inv_s, -FP8_MAX, FP8_MAX).astype(jnp.float8_e4m3fn).astype(jnp.float32)
    out = q @ w_fp8_t.astype(jnp.float32)
    return (out * s * s).astype(x.dtype)


if __name__ == "__main__":
    key = jax.random.PRNGKey(0)
    k_x, k_w, k_ws = jax.random.split(key, 3)

    num_tokens = 16
    hidden = 128  # hidden_size of TestModel; x has 2*hidden features

    x = jax.random.uniform(k_x, (num_tokens, 2 * hidden), dtype=jnp.float32)

    # TestModel.__init__: w = rand(H, H).to(fp8).t(); wscale = rand(1)
    w_raw = jax.random.uniform(k_w, (hidden, hidden), dtype=jnp.float32)
    w_fp8_t = w_raw.astype(jnp.float8_e4m3fn).T          # [H_in, H_out] fp8
    wscale = jax.random.uniform(k_ws, (1,), dtype=jnp.float32) + 1e-3

    out = silu_mul_fp8_linear(x, w_fp8_t, wscale)
    out = jax.block_until_ready(out)

    ref = reference(x, w_fp8_t, wscale)
    assert out.shape == (num_tokens, hidden)
    assert jnp.allclose(out, ref, atol=1e-3, rtol=1e-3), (
        float(jnp.max(jnp.abs(out - ref))))

    print("KERNEL_OK")
</pallas_src>

<mosaic_0001>
module attributes {stable_mosaic.version = 11 : i64} {
  func.func @_silu_mul_fp8_linear_kernel(%arg0: i32, %arg1: i32, %arg2: memref<1xf32, #tpu.memory_space<smem>>, %arg3: memref<16x128xf32, #tpu.memory_space<vmem>>, %arg4: memref<16x128xf32, #tpu.memory_space<vmem>>, %arg5: memref<128x128xbf16, #tpu.memory_space<vmem>>, %arg6: memref<16x128xf32, #tpu.memory_space<vmem>>, %arg7: memref<16x128xf32, #tpu.memory_space<vmem>>) attributes {dimension_semantics = [#tpu.dimension_semantics<parallel>, #tpu.dimension_semantics<arbitrary>], iteration_bounds = array<i64: 1, 1>, scalar_prefetch = 0 : i64, scratch_operands = 1 : i64, tpu.core_type = #tpu.core_type<tc>, window_params = [{transform_indices = @transform_0, window_bounds = array<i64: 1>}, {transform_indices = @transform_1, window_bounds = array<i64: 16, 128>}, {transform_indices = @transform_2, window_bounds = array<i64: 16, 128>}, {transform_indices = @transform_3, window_bounds = array<i64: 128, 128>}, {transform_indices = @transform_4, window_bounds = array<i64: 16, 128>}]} {
    %c0_i32 = arith.constant 0 : i32
    %0 = arith.cmpi eq, %arg1, %c0_i32 : i32
    %1 = arith.extui %0 : i1 to i32
    %c0_i32_0 = arith.constant 0 : i32
    %2 = arith.cmpi ne, %1, %c0_i32_0 : i32
    scf.if %2 {
      %cst_17 = arith.constant 0.000000e+00 : f32
      %31 = vector.broadcast %cst_17 : f32 to vector<16x128xf32>
      %c0_18 = arith.constant 0 : index
      %c0_19 = arith.constant 0 : index
      %32 = vector.load %arg7[%c0_18, %c0_19] : memref<16x128xf32, #tpu.memory_space<vmem>>, vector<16x128xf32>
      tpu.vector_store %arg7[%c0_18, %c0_19], %31 {strides = array<i32>} : memref<16x128xf32, #tpu.memory_space<vmem>>, vector<16x128xf32>,
    } else {
    }
    %c0 = arith.constant 0 : index
    %3 = memref.load %arg2[%c0] : memref<1xf32, #tpu.memory_space<smem>>
    %cst = arith.constant 1.000000e+00 : f32
    %4 = arith.divf %cst, %3 : f32
    %c0_1 = arith.constant 0 : index
    %c0_2 = arith.constant 0 : index
    %5 = vector.load %arg3[%c0_1, %c0_2] : memref<16x128xf32, #tpu.memory_space<vmem>>, vector<16x128xf32>
    %c0_3 = arith.constant 0 : index
    %c0_4 = arith.constant 0 : index
    %6 = vector.load %arg4[%c0_3, %c0_4] : memref<16x128xf32, #tpu.memory_space<vmem>>, vector<16x128xf32>
    %7 = arith.negf %5 : vector<16x128xf32>
    %8 = math.exp %7 : vector<16x128xf32>
    %cst_5 = arith.constant 1.000000e+00 : f32
    %9 = vector.broadcast %cst_5 : f32 to vector<16x128xf32>
    %10 = arith.addf %9, %8 : vector<16x128xf32>
    %11 = arith.divf %9, %10 : vector<16x128xf32>
    %12 = arith.mulf %5, %11 : vector<16x128xf32>
    %13 = arith.mulf %12, %6 : vector<16x128xf32>
    %14 = vector.broadcast %4 : f32 to vector<16x128xf32>
    %15 = arith.mulf %13, %14 : vector<16x128xf32>
    %cst_6 = arith.constant -4.480000e+02 : f32
    %cst_7 = arith.constant 4.480000e+02 : f32
    %16 = vector.broadcast %cst_6 : f32 to vector<16x128xf32>
    %17 = arith.maximumf %16, %15 : vector<16x128xf32>
    %18 = vector.broadcast %cst_7 : f32 to vector<16x128xf32>
    %19 = arith.minimumf %18, %17 : vector<16x128xf32>
    %20 = arith.truncf %19 : vector<16x128xf32> to vector<16x128xf8E4M3FN>
    %21 = arith.extf %20 : vector<16x128xf8E4M3FN> to vector<16x128xf32>
    %22 = arith.truncf %21 : vector<16x128xf32> to vector<16x128xbf16>
    %c0_8 = arith.constant 0 : index
    %c0_9 = arith.constant 0 : index
    %23 = vector.load %arg7[%c0_8, %c0_9] : memref<16x128xf32, #tpu.memory_space<vmem>>, vector<16x128xf32>
    %c0_10 = arith.constant 0 : index
    %c0_11 = arith.constant 0 : index
    %24 = vector.load %arg5[%c0_10, %c0_11] : memref<128x128xbf16, #tpu.memory_space<vmem>>, vector<128x128xbf16>
    %cst_12 = arith.constant dense<0.000000e+00> : vector<16x128xf32>
    %25 = tpu.matmul %22, %24, %cst_12 {dimension_numbers = #tpu.dot_dimension_numbers<[1], [0], [0], [1], [0, 0, 1, 1], [], []>} : vector<16x128xbf16>, vector<128x128xbf16>, vector<16x128xf32> -> vector<16x128xf32>
    %26 = arith.addf %23, %25 : vector<16x128xf32>
    %c0_13 = arith.constant 0 : index
    %c0_14 = arith.constant 0 : index
    %27 = vector.load %arg7[%c0_13, %c0_14] : memref<16x128xf32, #tpu.memory_space<vmem>>, vector<16x128xf32>
    tpu.vector_store %arg7[%c0_13, %c0_14], %26 {strides = array<i32>} : memref<16x128xf32, #tpu.memory_space<vmem>>, vector<16x128xf32>,
    %c0_i32_15 = arith.constant 0 : i32
    %28 = arith.cmpi eq, %arg1, %c0_i32_15 : i32
    %29 = arith.extui %28 : i1 to i32
    %c0_i32_16 = arith.constant 0 : i32
    %30 = arith.cmpi ne, %29, %c0_i32_16 : i32
    scf.if %30 {
      %31 = arith.mulf %3, %3 : f32
      %c0_17 = arith.constant 0 : index
      %c0_18 = arith.constant 0 : index
      %32 = vector.load %arg7[%c0_17, %c0_18] : memref<16x128xf32, #tpu.memory_space<vmem>>, vector<16x128xf32>
      %33 = vector.broadcast %31 : f32 to vector<16x128xf32>
      %34 = arith.mulf %32, %33 : vector<16x128xf32>
      %c0_19 = arith.constant 0 : index
      %c0_20 = arith.constant 0 : index
      %35 = vector.load %arg6[%c0_19, %c0_20] : memref<16x128xf32, #tpu.memory_space<vmem>>, vector<16x128xf32>
      tpu.vector_store %arg6[%c0_19, %c0_20], %34 {strides = array<i32>} : memref<16x128xf32, #tpu.memory_space<vmem>>, vector<16x128xf32>,
    } else {
    }
    return
  }
  func.func @transform_0(%arg0: i32, %arg1: i32) -> i32 {
    %c0_i32 = arith.constant 0 : i32
    %c0_i32_0 = arith.constant 0 : i32
    return %c0_i32 : i32
  }
  func.func @transform_1(%arg0: i32, %arg1: i32) -> (i32, i32) {
    %c0_i32 = arith.constant 0 : i32
    return %arg0, %arg1 : i32, i32
  }
  func.func @transform_2(%arg0: i32, %arg1: i32) -> (i32, i32) {
    %c0_i32 = arith.constant 0 : i32
    return %arg0, %arg1 : i32, i32
  }
  func.func @transform_3(%arg0: i32, %arg1: i32) -> (i32, i32) {
    %c0_i32 = arith.constant 0 : i32
    %c0_i32_0 = arith.constant 0 : i32
    return %arg1, %c0_i32 : i32, i32
  }
  func.func @transform_4(%arg0: i32, %arg1: i32) -> (i32, i32) {
    %c0_i32 = arith.constant 0 : i32
    %c0_i32_0 = arith.constant 0 : i32
    return %arg0, %c0_i32 : i32, i32
  }
}

</mosaic_0001>

<llo_original>
// kernel: tpu_custom_call.1
$region0: #{tpu_custom_call.1}
  #allocation0 [shape = 'u32[]', space=smem, size = 0x4, offset = 0x4, fixed_abs, tag = 'smem constant byte address 0x4 - core index']
  #allocation1 [shape = 'u32[144,128]{1,0:T(1,128)}', space=vmem, size = 0x12000, scoped, tag = 'internal scratch']
  #allocation2 [shape = 'f32[16,128]{1,0:T(8,128)}', space=vmem, size = 0x2000, scoped, tag = 'scratch operand']
  #allocation3 [shape = 'f32[1]{0:T(128)S(6)}', space=smem, size = 0x200, scoped, tag = 'scoped memory for tpu_custom_call.1']
  %s0 = inlined_call_operand.<no memory space> [shape: f32[1], index: 0, kind: input, shape index: {}]
  %s1 = inlined_call_operand.hbm [shape: f32[16,128], index: 1, kind: input, shape index: {}]
  %s2 = inlined_call_operand.hbm [shape: f32[16,128], index: 2, kind: input, shape index: {}]
  %s3 = inlined_call_operand.hbm [shape: bf16[128,128], index: 3, kind: input, shape index: {}]
  %s4 = inlined_call_operand.hbm [shape: f32[16,128], index: 4, kind: output, shape index: {}]
  %s5 = sld [smem:[#allocation0]]
  $region46: #{tpu_custom_call.1} parent=0
    _
  %s7 = ssub.s32 1, %s5
  %s8 = scalar_select 0, %s7, %s5
  %9 = sst [smem:[#allocation3]] %s0
  $region1: #{tpu_custom_call.1} parent=0
    #allocation4 [shape = 'u8[8192]{0}', space=vmem, size = 0x2000, scoped, tag = 'input window, operand 1, single buffered']
    #allocation5 [shape = 's32[1]{0}', space=sflag, size = 0x4, scoped, tag = 'scoped memory for tpu_custom_call.1']
    #allocation6 [shape = 's32[1]{0}', space=sflag, size = 0x4, scoped, tag = 'scoped memory for tpu_custom_call.1']
    #allocation7 [shape = 'u8[8192]{0}', space=vmem, size = 0x2000, scoped, tag = 'input window, operand 2, single buffered']
    #allocation8 [shape = 's32[1]{0}', space=sflag, size = 0x4, scoped, tag = 'scoped memory for tpu_custom_call.1']
    #allocation9 [shape = 'u8[32768]{0}', space=vmem, size = 0x8000, scoped, tag = 'input window, operand 3, single buffered']
    #allocation10 [shape = 'u8[8192]{0}', space=vmem, size = 0x2000, scoped, tag = 'output window, operand 0, single buffered']
    %10 = vsyncpa [#allocation5], 0
    %11 = vsyncpa [#allocation8], 0
    %12 = vsyncpa [#allocation6], 0
    // Predicated region
    $region2: #{tpu_custom_call.1} parent=1 // pred_check
      _
    $region3: #{tpu_custom_call.1} parent=1 // pred_check_branch
      %14 = sbr.rel (0) target = $region5
    $region4: #{tpu_custom_call.1} parent=1 // pred_region
      _
    $region5: #{tpu_custom_call.1} parent=1 // pred_fallthru
      _
    // Predicated region
    $region6: #{tpu_custom_call.1} parent=1 // pred_check
      _
    $region7: #{tpu_custom_call.1} parent=1 // pred_check_branch
      %16 = sbr.rel (0) target = $region9
    $region8: #{tpu_custom_call.1} parent=1 // pred_region
      %s18 = ssub.s32 256, 256
      %19 = vsyncadd [#allocation5], %s18
      %s20 = sshll.u32 [#allocation4], 4
      %s21 = int_to_ptr.vmem [resolvable:$true] %s20
      %26 = dma.hbm_to_vmem [thread:$0]  %s1, 256, %s21, [#allocation5], 128, 128, 8
    $region9: #{tpu_custom_call.1} parent=1 // pred_fallthru
      _
    // Predicated region
    $region10: #{tpu_custom_call.1} parent=1 // pred_check
      _
    $region11: #{tpu_custom_call.1} parent=1 // pred_check_branch
      %28 = sbr.rel (0) target = $region13
    $region12: #{tpu_custom_call.1} parent=1 // pred_region
      %s30 = ssub.s32 256, 256
      %31 = vsyncadd [#allocation8], %s30
      %s32 = sshll.u32 [#allocation7], 4
      %s33 = int_to_ptr.vmem [resolvable:$true] %s32
      %38 = dma.hbm_to_vmem [thread:$0]  %s2, 256, %s33, [#allocation8], 128, 128, 8
    $region13: #{tpu_custom_call.1} parent=1 // pred_fallthru
      _
    // Predicated region
    $region14: #{tpu_custom_call.1} parent=1 // pred_check
      _
    $region15: #{tpu_custom_call.1} parent=1 // pred_check_branch
      %40 = sbr.rel (0) target = $region17
    $region16: #{tpu_custom_call.1} parent=1 // pred_region
      %s42 = ssub.s32 1024, 1024
      %43 = vsyncadd [#allocation8], %s42
      %s44 = sshll.u32 [#allocation9], 4
      %s45 = int_to_ptr.vmem [resolvable:$true] %s44
      %50 = dma.hbm_to_vmem [thread:$0]  %s3, 1024, %s45, [#allocation8], 64, 64, 4
    $region17: #{tpu_custom_call.1} parent=1 // pred_fallthru
      _
    // Predicated region
    $region18: #{tpu_custom_call.1} parent=1 // pred_check
      _
    $region19: #{tpu_custom_call.1} parent=1 // pred_check_branch
      %52 = sbr.rel (0) target = $region21
    $region20: #{tpu_custom_call.1} parent=1 // pred_region
      %53 = dma.done [#allocation5], 256
    $region21: #{tpu_custom_call.1} parent=1 // pred_fallthru
      _
    // Predicated region
    $region22: #{tpu_custom_call.1} parent=1 // pred_check
      _
    $region23: #{tpu_custom_call.1} parent=1 // pred_check_branch
      %55 = sbr.rel (0) target = $region25
    $region24: #{tpu_custom_call.1} parent=1 // pred_region
      %56 = dma.done [#allocation8], 256
    $region25: #{tpu_custom_call.1} parent=1 // pred_fallthru
      _
    // Predicated region
    $region26: #{tpu_custom_call.1} parent=1 // pred_check
      _
    $region27: #{tpu_custom_call.1} parent=1 // pred_check_branch
      %58 = sbr.rel (0) target = $region29
    $region28: #{tpu_custom_call.1} parent=1 // pred_region
      %59 = dma.done [#allocation8], 1024
    $region29: #{tpu_custom_call.1} parent=1 // pred_fallthru
      _
    %p61 = scmp.eq.s32.totalorder 0, 0
    // Predicated region
    $region30: #{tpu_custom_call.1} parent=1 // pred_check
      %p62 = pneg %p61
    $region31: #{tpu_custom_call.1} parent=1 // pred_check_branch
      %64 = sbr.rel (%p62) target = $region33
    $region32: #{tpu_custom_call.1} parent=1 // pred_region
      %65 = vst [vmem:[#allocation2] sm:$0xff] 0.0
      %66 = vst [vmem:[#allocation2 + $0x8] sm:$0xff] 0.0
    $region33: #{tpu_custom_call.1} parent=1 // pred_fallthru
      _
    %s67 = sld [smem:[#allocation3]]
    %v68 = vstv %s67
    %v69 = vrcp.pop %v68
    %s70 = vtos %v69
    %v71 = vld [vmem:[#allocation4] sm:$0xff]
    %v72 = vld [vmem:[#allocation4 + $0x8] sm:$0xff]
    %v73 = vld [vmem:[#allocation7] sm:$0xff]
    %v74 = vld [vmem:[#allocation7 + $0x8] sm:$0xff]
    %v75 = vxor.u32 %v71, 2147483648
    %v76 = vxor.u32 %v72, 2147483648
    %v77 = vmul.f32 %v75, 1.442695
    %v78 = vpow.pop %v77
    %v79 = vmul.f32 %v76, 1.442695
    %v80 = vpow.pop %v79
    %v81 = vadd.f32 %v78, 1.0
    %v82 = vadd.f32 %v80, 1.0
    %v83 = vrcp.pop %v81
    %v84 = vmul.f32 1.0, %v83
    %v85 = vrcp.pop %v82
    %v86 = vmul.f32 1.0, %v85
    %v87 = vmul.f32 %v71, %v84
    %v88 = vmul.f32 %v72, %v86
    %v89 = vmul.f32 %v87, %v73
    %v90 = vmul.f32 %v88, %v74
    %v91 = vstv %s70
    %v92 = vmul.f32 %v89, %v91
    %v93 = vmul.f32 %v90, %v91
    %v94 = vmax.f32 %v92, -448.0
    %v95 = vmax.f32 %v93, -448.0
    %v96 = vmin.f32 %v94, 448.0
    %v97 = vmin.f32 %v95, 448.0
    %v98 = vpack.c.f32.eXmY %v96, %v97, 61788
    %v102 = vpack.c.b8 %v98, %v98
    %v104 = vunpack.c.0.f8e4m3fn %v102
    %v105 = vunpack.c.1.f8e4m3fn %v102
    %v106 = vpack.c.bf16 %v105, %v104
    %v107 = vld [vmem:[#allocation2] sm:$0xff]
    %v108 = vld [vmem:[#allocation2 + $0x8] sm:$0xff]
    %v109 = vld [vmem:[#allocation9] sm:$0xf]
    %v110 = vld [vmem:[#allocation9 + $0x4] sm:$0xf]
    %v111 = vld [vmem:[#allocation9 + $0x8] sm:$0xf]
    %v112 = vld [vmem:[#allocation9 + $0xc] sm:$0xf]
    %v113 = vld [vmem:[#allocation9 + $0x10] sm:$0xf]
    %v114 = vld [vmem:[#allocation9 + $0x14] sm:$0xf]
    %v115 = vld [vmem:[#allocation9 + $0x18] sm:$0xf]
    %v116 = vld [vmem:[#allocation9 + $0x1c] sm:$0xf]
    %v117 = vld [vmem:[#allocation9 + $0x20] sm:$0xf]
    %v118 = vld [vmem:[#allocation9 + $0x24] sm:$0xf]
    %v119 = vld [vmem:[#allocation9 + $0x28] sm:$0xf]
    %v120 = vld [vmem:[#allocation9 + $0x2c] sm:$0xf]
    %v121 = vld [vmem:[#allocation9 + $0x30] sm:$0xf]
    %v122 = vld [vmem:[#allocation9 + $0x34] sm:$0xf]
    %v123 = vld [vmem:[#allocation9 + $0x38] sm:$0xf]
    %v124 = vld [vmem:[#allocation9 + $0x3c] sm:$0xf]
    %v141 = vunpack.c.l.b16 %v109
    %v142 = vunpack.c.l.b16 %v110
    %v143 = vunpack.c.l.b16 %v111
    %v144 = vunpack.c.l.b16 %v112
    %v145 = vunpack.c.l.b16 %v113
    %v146 = vunpack.c.l.b16 %v114
    %v147 = vunpack.c.l.b16 %v115
    %v148 = vunpack.c.l.b16 %v116
    %v149 = vunpack.c.l.b16 %v117
    %v150 = vunpack.c.l.b16 %v118
    %v151 = vunpack.c.l.b16 %v119
    %v152 = vunpack.c.l.b16 %v120
    %v153 = vunpack.c.l.b16 %v121
    %v154 = vunpack.c.l.b16 %v122
    %v155 = vunpack.c.l.b16 %v123
    %v156 = vunpack.c.l.b16 %v124
    %v157 = vpack.c.b16 %v142, %v141
    %v158 = vpack.c.b16 %v144, %v143
    %v159 = vpack.c.b16 %v146, %v145
    %v160 = vpack.c.b16 %v148, %v147
    %v161 = vpack.c.b16 %v150, %v149
    %v162 = vpack.c.b16 %v152, %v151
    %v163 = vpack.c.b16 %v154, %v153
    %v164 = vpack.c.b16 %v156, %v155
    %173 = vmatprep.subr.bf16.mxu0 0
    %174 = vmatpush1.bf16.msra.mxu0 %v157
    %175 = vmatprep.subr.bf16.mxu0 0
    %176 = vmatpush1.bf16.msra.mxu0 %v158
    %177 = vmatprep.subr.bf16.mxu0 0
    %178 = vmatpush1.bf16.msra.mxu0 %v159
    %179 = vmatprep.subr.bf16.mxu0 0
    %180 = vmatpush1.bf16.msra.mxu0 %v160
    %181 = vmatprep.subr.bf16.mxu0 0
    %182 = vmatpush1.bf16.msra.mxu0 %v161
    %183 = vmatprep.subr.bf16.mxu0 0
    %184 = vmatpush1.bf16.msra.mxu0 %v162
    %185 = vmatprep.subr.bf16.mxu0 0
    %186 = vmatpush1.bf16.msra.mxu0 %v163
    %187 = vmatprep.subr.bf16.mxu0 0
    %188 = vmatpush1.bf16.msra.mxu0 %v164
    %189 = vmatprep.subr.bf16.mxu0 0
    %190 = vmatpush1.bf16.msra.mxu0 0
    %191 = vmatprep.subr.bf16.mxu0 0
    %192 = vmatpush1.bf16.msra.mxu0 0
    %193 = vmatprep.subr.bf16.mxu0 0
    %194 = vmatpush1.bf16.msra.mxu0 0
    %195 = vmatprep.subr.bf16.mxu0 0
    %196 = vmatpush1.bf16.msra.mxu0 0
    %197 = vmatprep.subr.bf16.mxu0 0
    %198 = vmatpush1.bf16.msra.mxu0 0
    %199 = vmatprep.subr.bf16.mxu0 0
    %200 = vmatpush1.bf16.msra.mxu0 0
    %201 = vmatprep.subr.bf16.mxu0 0
    %202 = vmatpush1.bf16.msra.mxu0 0
    %203 = vmatprep.subr.bf16.mxu0 0
    %204 = vmatpush1.bf16.msra.mxu0 0
    %205 = vmatprep.mubr.bf16.mxu0 0
    %206 = vmatmul.mubr.bf16.gmra.mrb[0].mxu0 %v106
    %v207 = vpop.f32.mrb[0].mxu0
    %v208 = vadd.f32 0.0, %v207
    %v209 = vpop.f32.mrb[0].mxu0
    %v210 = vpop.f32.mrb[0].mxu0
    %v211 = vadd.f32 0.0, %v210
    %v212 = vpop.f32.mrb[0].mxu0
    %213 = vdwg.mxu0
    %v214 = vadd.f32 %v107, %v208
    %v215 = vadd.f32 %v108, %v211
    %216 = vst [vmem:[#allocation2] sm:$0xff] %v214
    %217 = vst [vmem:[#allocation2 + $0x8] sm:$0xff] %v215
    // Predicated region
    $region34: #{tpu_custom_call.1} parent=1 // pred_check
      %p218 = pneg %p61
    $region35: #{tpu_custom_call.1} parent=1 // pred_check_branch
      %220 = sbr.rel (%p218) target = $region37
    $region36: #{tpu_custom_call.1} parent=1 // pred_region
      %s221 = smul.f32 %s67, %s67
      %v222 = vld [vmem:[#allocation2] sm:$0xff]
      %v223 = vld [vmem:[#allocation2 + $0x8] sm:$0xff]
      %v224 = vstv %s221
      %v225 = vmul.f32 %v222, %v224
      %v226 = vmul.f32 %v223, %v224
      %227 = vst [vmem:[#allocation10] sm:$0xff] %v225
      %228 = vst [vmem:[#allocation10 + $0x8] sm:$0xff] %v226
    $region37: #{tpu_custom_call.1} parent=1 // pred_fallthru
      _
    // Predicated region
    $region38: #{tpu_custom_call.1} parent=1 // pred_check
      _
    $region39: #{tpu_custom_call.1} parent=1 // pred_check_branch
      %230 = sbr.rel (0) target = $region41
    $region40: #{tpu_custom_call.1} parent=1 // pred_region
      %s232 = ssub.s32 256, 256
      %233 = vsyncadd [#allocation6], %s232
      %s234 = sshll.u32 [#allocation10], 4
      %s235 = int_to_ptr.vmem [resolvable:$true] %s234
      %240 = dma.vmem_to_hbm [thread:$0]  %s235, 256, %s4, [#allocation6], 128, 128, 8
    $region41: #{tpu_custom_call.1} parent=1 // pred_fallthru
      _
    // Predicated region
    $region42: #{tpu_custom_call.1} parent=1 // pred_check
      _
    $region43: #{tpu_custom_call.1} parent=1 // pred_check_branch
      %242 = sbr.rel (0) target = $region45
    $region44: #{tpu_custom_call.1} parent=1 // pred_region
      %243 = dma.done [#allocation6], 256
    $region45: #{tpu_custom_call.1} parent=1 // pred_fallthru
      _
    %244 = vsyncpa [#allocation5], 1
    %245 = vsyncpa [#allocation8], 1
    %246 = vsyncpa [#allocation6], 1

</llo_original>
